<compile_context>
chip_gen: v7x
topology: tpu7x:2x2x1
jax: 0.10.0
libtpu: 0.0.40
codegen_flags: <defaults>
</compile_context>

<pallas_src>
import functools

import jax
import jax.numpy as jnp
from jax.experimental import pallas as pl
from jax.experimental.pallas import tpu as pltpu


def _mlm_kernel(x_ref, w_ref, b_ref, o_ref, m_ref, l_ref, *, vocab, tn, ragged):
    # x_ref: (tm, d_model) bf16      w_ref: (d_model, tn) bf16
    # b_ref: (1, tn) f32             o_ref: (tm, tn) f32 (streamed per vocab tile)
    # m_ref/l_ref: (tm, 1) f32 scratch; after pass 0, m_ref holds the row LSE.
    p = pl.program_id(1)
    j = pl.program_id(2)
    nj = pl.num_programs(2)

    # Logits for this vocab tile (recomputed on both passes): MXU bf16 x bf16
    # with f32 accumulation, bias added in f32.
    y = jnp.dot(x_ref[...], w_ref[...], preferred_element_type=jnp.float32)
    y = y + b_ref[...]
    if ragged:
        # Mask the out-of-range columns of the (partial) last vocab tile so
        # they never影响 the max / sum-exp and are ignored in the output.
        col = jax.lax.broadcasted_iota(jnp.int32, y.shape, 1) + j * tn
        y = jnp.where(col < vocab, y, jnp.float32(-1e30))

    @pl.when(p == 0)
    def _pass0():
        @pl.when(j == 0)
        def _():
            m_ref[...] = jnp.full_like(m_ref, -jnp.inf)
            l_ref[...] = jnp.zeros_like(l_ref)

        # Online (flash-style) log-sum-exp update over vocab tiles.
        m_prev = m_ref[...]
        m_new = jnp.maximum(m_prev, jnp.max(y, axis=-1, keepdims=True))
        l_ref[...] = (l_ref[...] * jnp.exp(m_prev - m_new)
                      + jnp.sum(jnp.exp(y - m_new), axis=-1, keepdims=True))
        m_ref[...] = m_new

        @pl.when(j == nj - 1)
        def _():
            # Fold running max / running sum-exp into the final LSE (reuse m_ref).
            m_ref[...] = m_ref[...] + jnp.log(l_ref[...])

    @pl.when(p == 1)
    def _pass1():
        # log_softmax = logits - lse, streamed tile-by-tile to HBM.
        o_ref[...] = (y - m_ref[...]).astype(o_ref.dtype)


def _round_up(a, m):
    return ((a + m - 1) // m) * m


def _cdiv(a, b):
    return (a + b - 1) // b


def _pick_tn(vocab, tn_max):
    # Prefer a lane-aligned tile that divides vocab exactly (no ragged tile,
    # no wrapper-side weight padding).
    for cand in (2048, 1024, 512, 256, 128):
        if cand <= tn_max and vocab % cand == 0:
            return cand
    return min(tn_max, _round_up(vocab, 128))


def _pick_tm(M, tm_max):
    tm = min(tm_max, _round_up(M, 16))  # 16-aligned for bf16 sublane packing
    # v7x megacore: give the "parallel" row axis >= 2 tiles when M is big
    # enough that splitting does not shrink the tile below 128 rows.
    if _cdiv(M, tm) < 2 and M >= 256:
        tm = _round_up(_cdiv(M, 2), 16)
    return tm


def masked_language_model(x, w, b, *, tm_max=512, tn_max=2048):
    """x: (batch, seq, d_model), w: (d_model, vocab), b: (vocab,)
    Returns f32 log-probabilities of shape (batch*seq, vocab)."""
    batch, seq, d_model = x.shape
    vocab = w.shape[1]
    M = batch * seq

    # bf16 inputs for the MXU; bias / accumulation / log-softmax math stay f32.
    x2d = x.reshape(M, d_model).astype(jnp.bfloat16)
    w_bf = w.astype(jnp.bfloat16)
    b2d = b.reshape(1, vocab).astype(jnp.float32)

    tm = _pick_tm(M, tm_max)
    tn = _pick_tn(vocab, tn_max)
    gm = _cdiv(M, tm)
    gj = _cdiv(vocab, tn)
    ragged = (vocab % tn) != 0

    grid = (gm, 2, gj)  # (row tiles, pass {lse, write}, vocab tiles)

    # Per-step VMEM footprint (double-buffered pipeline) -> explicit limit.
    vmem_bytes = (2 * tm * d_model * 2          # x tile (bf16)
                  + 2 * d_model * tn * 2        # W tile (bf16)
                  + 2 * 1 * tn * 4              # bias tile (f32)
                  + 2 * tm * tn * 4             # output tile (f32)
                  + 2 * tm * 128 * 4)           # (tm, 1) scratch, lane-padded
    vmem_limit = int(min(48 * 2**20, max(16 * 2**20, 2 * vmem_bytes)))

    kernel = functools.partial(_mlm_kernel, vocab=vocab, tn=tn, ragged=ragged)

    out = pl.pallas_call(
        kernel,
        out_shape=jax.ShapeDtypeStruct((M, vocab), jnp.float32),
        grid_spec=pltpu.PrefetchScalarGridSpec(
            num_scalar_prefetch=0,
            grid=grid,
            in_specs=[
                # x rows: resident across both passes and all vocab tiles.
                pl.BlockSpec((tm, d_model), lambda i, p, j: (i, 0)),
                # Weight / bias columns: streamed per vocab tile on each pass.
                pl.BlockSpec((d_model, tn), lambda i, p, j: (0, j)),
                pl.BlockSpec((1, tn), lambda i, p, j: (0, j)),
            ],
            # Pass 0 parks the (unwritten) output window on vocab tile 0;
            # pass 1 streams one normalized (tm, tn) tile per step to HBM.
            out_specs=pl.BlockSpec((tm, tn), lambda i, p, j: (i, j * p)),
            scratch_shapes=[
                pltpu.VMEM((tm, 1), jnp.float32),  # running max -> LSE
                pltpu.VMEM((tm, 1), jnp.float32),  # running sum-exp
            ],
        ),
        compiler_params=pltpu.CompilerParams(
            dimension_semantics=("parallel", "arbitrary", "arbitrary"),
            vmem_limit_bytes=vmem_limit,
        ),
    )(x2d, w_bf, b2d)

    return out


if __name__ == "__main__":
    batch, seq, d_model, vocab_size = 2, 8, 32, 128

    key = jax.random.PRNGKey(0)
    kx, kw, kb = jax.random.split(key, 3)

    # Deterministic parameter init (PyTorch Linear-style uniform bound).
    bound = 1.0 / (d_model ** 0.5)
    w = jax.random.uniform(kw, (d_model, vocab_size), jnp.float32, -bound, bound)
    b = jax.random.uniform(kb, (vocab_size,), jnp.float32, -bound, bound)
    x = jax.random.normal(kx, (batch, seq, d_model), jnp.float32)

    out = masked_language_model(x, w, b)
    out = jax.block_until_ready(out)

    # Reference in plain JAX with the same bf16 rounding of x / W (f32 math).
    xr = x.reshape(-1, d_model).astype(jnp.bfloat16).astype(jnp.float32)
    wr = w.astype(jnp.bfloat16).astype(jnp.float32)
    ref = jax.nn.log_softmax(xr @ wr + b, axis=-1)

    assert out.shape == (batch * seq, vocab_size)
    assert jnp.allclose(out, ref, atol=2e-4, rtol=2e-4)

    print("KERNEL_OK")
</pallas_src>

<mosaic_0001>
module attributes {stable_mosaic.version = 11 : i64} {
  func.func @_mlm_kernel(%arg0: i32, %arg1: i32, %arg2: i32, %arg3: memref<16x32xbf16, #tpu.memory_space<vmem>>, %arg4: memref<32x128xbf16, #tpu.memory_space<vmem>>, %arg5: memref<1x128xf32, #tpu.memory_space<vmem>>, %arg6: memref<16x128xf32, #tpu.memory_space<vmem>>, %arg7: memref<16x1xf32, #tpu.memory_space<vmem>>, %arg8: memref<16x1xf32, #tpu.memory_space<vmem>>) attributes {dimension_semantics = [#tpu.dimension_semantics<parallel>, #tpu.dimension_semantics<arbitrary>, #tpu.dimension_semantics<arbitrary>], iteration_bounds = array<i64: 1, 2, 1>, scalar_prefetch = 0 : i64, scratch_operands = 2 : i64, tpu.core_type = #tpu.core_type<tc>, window_params = [{transform_indices = @transform_0, window_bounds = array<i64: 16, 32>}, {transform_indices = @transform_1, window_bounds = array<i64: 32, 128>}, {transform_indices = @transform_2, window_bounds = array<i64: 1, 128>}, {transform_indices = @transform_3, window_bounds = array<i64: 16, 128>}]} {
    %c0 = arith.constant 0 : index
    %c0_0 = arith.constant 0 : index
    %0 = vector.load %arg3[%c0, %c0_0] : memref<16x32xbf16, #tpu.memory_space<vmem>>, vector<16x32xbf16>
    %c0_1 = arith.constant 0 : index
    %c0_2 = arith.constant 0 : index
    %1 = vector.load %arg4[%c0_1, %c0_2] : memref<32x128xbf16, #tpu.memory_space<vmem>>, vector<32x128xbf16>
    %cst = arith.constant dense<0.000000e+00> : vector<16x128xf32>
    %2 = tpu.matmul %0, %1, %cst {dimension_numbers = #tpu.dot_dimension_numbers<[1], [0], [0], [1], [0, 0, 1, 1], [], []>} : vector<16x32xbf16>, vector<32x128xbf16>, vector<16x128xf32> -> vector<16x128xf32>
    %c0_3 = arith.constant 0 : index
    %c0_4 = arith.constant 0 : index
    %3 = vector.load %arg5[%c0_3, %c0_4] : memref<1x128xf32, #tpu.memory_space<vmem>>, vector<1x128xf32>
    %4 = vector.broadcast %3 : vector<1x128xf32> to vector<16x128xf32>
    %5 = arith.addf %2, %4 : vector<16x128xf32>
    %c0_i32 = arith.constant 0 : i32
    %6 = arith.cmpi eq, %arg1, %c0_i32 : i32
    %7 = arith.extui %6 : i1 to i32
    %c0_i32_5 = arith.constant 0 : i32
    %8 = arith.cmpi ne, %7, %c0_i32_5 : i32
    scf.if %8 {
      %c0_i32_7 = arith.constant 0 : i32
      %12 = arith.cmpi eq, %arg2, %c0_i32_7 : i32
      %13 = arith.extui %12 : i1 to i32
      %c0_i32_8 = arith.constant 0 : i32
      %14 = arith.cmpi ne, %13, %c0_i32_8 : i32
      scf.if %14 {
        %cst_21 = arith.constant 0xFF800000 : f32
        %34 = vector.broadcast %cst_21 : f32 to vector<16x1xf32>
        %c0_22 = arith.constant 0 : index
        %c0_23 = arith.constant 0 : index
        %35 = vector.load %arg7[%c0_22, %c0_23] : memref<16x1xf32, #tpu.memory_space<vmem>>, vector<16x1xf32>
        tpu.vector_store %arg7[%c0_22, %c0_23], %34 {strides = array<i32>} : memref<16x1xf32, #tpu.memory_space<vmem>>, vector<16x1xf32>,
        %cst_24 = arith.constant 0.000000e+00 : f32
        %36 = vector.broadcast %cst_24 : f32 to vector<16x1xf32>
        %c0_25 = arith.constant 0 : index
        %c0_26 = arith.constant 0 : index
        %37 = vector.load %arg8[%c0_25, %c0_26] : memref<16x1xf32, #tpu.memory_space<vmem>>, vector<16x1xf32>
        tpu.vector_store %arg8[%c0_25, %c0_26], %36 {strides = array<i32>} : memref<16x1xf32, #tpu.memory_space<vmem>>, vector<16x1xf32>,
      } else {
      }
      %c0_9 = arith.constant 0 : index
      %c0_10 = arith.constant 0 : index
      %15 = vector.load %arg7[%c0_9, %c0_10] : memref<16x1xf32, #tpu.memory_space<vmem>>, vector<16x1xf32>
      %cst_11 = arith.constant dense<0xFF800000> : vector<16xf32>
      %16 = vector.multi_reduction <maximumf>, %5, %cst_11 [1] : vector<16x128xf32> to vector<16xf32>
      %17 = vector.shape_cast %16 : vector<16xf32> to vector<16x1xf32>
      %18 = arith.maximumf %15, %17 : vector<16x1xf32>
      %c0_12 = arith.constant 0 : index
      %c0_13 = arith.constant 0 : index
      %19 = vector.load %arg8[%c0_12, %c0_13] : memref<16x1xf32, #tpu.memory_space<vmem>>, vector<16x1xf32>
      %20 = arith.subf %15, %18 : vector<16x1xf32>
      %21 = math.exp %20 : vector<16x1xf32>
      %22 = arith.mulf %19, %21 : vector<16x1xf32>
      %23 = vector.broadcast %18 : vector<16x1xf32> to vector<16x128xf32>
      %24 = arith.subf %5, %23 : vector<16x128xf32>
      %25 = math.exp %24 : vector<16x128xf32>
      %cst_14 = arith.constant dense<0.000000e+00> : vector<16xf32>
      %26 = vector.multi_reduction <add>, %25, %cst_14 [1] : vector<16x128xf32> to vector<16xf32>
      %27 = vector.shape_cast %26 : vector<16xf32> to vector<16x1xf32>
      %28 = arith.addf %22, %27 : vector<16x1xf32>
      %c0_15 = arith.constant 0 : index
      %c0_16 = arith.constant 0 : index
      %29 = vector.load %arg8[%c0_15, %c0_16] : memref<16x1xf32, #tpu.memory_space<vmem>>, vector<16x1xf32>
      tpu.vector_store %arg8[%c0_15, %c0_16], %28 {strides = array<i32>} : memref<16x1xf32, #tpu.memory_space<vmem>>, vector<16x1xf32>,
      %c0_17 = arith.constant 0 : index
      %c0_18 = arith.constant 0 : index
      %30 = vector.load %arg7[%c0_17, %c0_18] : memref<16x1xf32, #tpu.memory_space<vmem>>, vector<16x1xf32>
      tpu.vector_store %arg7[%c0_17, %c0_18], %18 {strides = array<i32>} : memref<16x1xf32, #tpu.memory_space<vmem>>, vector<16x1xf32>,
      %c0_i32_19 = arith.constant 0 : i32
      %31 = arith.cmpi eq, %arg2, %c0_i32_19 : i32
      %32 = arith.extui %31 : i1 to i32
      %c0_i32_20 = arith.constant 0 : i32
      %33 = arith.cmpi ne, %32, %c0_i32_20 : i32
      scf.if %33 {
        %c0_21 = arith.constant 0 : index
        %c0_22 = arith.constant 0 : index
        %34 = vector.load %arg7[%c0_21, %c0_22] : memref<16x1xf32, #tpu.memory_space<vmem>>, vector<16x1xf32>
        %c0_23 = arith.constant 0 : index
        %c0_24 = arith.constant 0 : index
        %35 = vector.load %arg8[%c0_23, %c0_24] : memref<16x1xf32, #tpu.memory_space<vmem>>, vector<16x1xf32>
        %36 = math.log %35 : vector<16x1xf32>
        %37 = arith.addf %34, %36 : vector<16x1xf32>
        %c0_25 = arith.constant 0 : index
        %c0_26 = arith.constant 0 : index
        %38 = vector.load %arg7[%c0_25, %c0_26] : memref<16x1xf32, #tpu.memory_space<vmem>>, vector<16x1xf32>
        tpu.vector_store %arg7[%c0_25, %c0_26], %37 {strides = array<i32>} : memref<16x1xf32, #tpu.memory_space<vmem>>, vector<16x1xf32>,
      } else {
      }
    } else {
    }
    %c1_i32 = arith.constant 1 : i32
    %9 = arith.cmpi eq, %arg1, %c1_i32 : i32
    %10 = arith.extui %9 : i1 to i32
    %c0_i32_6 = arith.constant 0 : i32
    %11 = arith.cmpi ne, %10, %c0_i32_6 : i32
    scf.if %11 {
      %c0_7 = arith.constant 0 : index
      %c0_8 = arith.constant 0 : index
      %12 = vector.load %arg7[%c0_7, %c0_8] : memref<16x1xf32, #tpu.memory_space<vmem>>, vector<16x1xf32>
      %13 = vector.broadcast %12 : vector<16x1xf32> to vector<16x128xf32>
      %14 = arith.subf %5, %13 : vector<16x128xf32>
      %c0_9 = arith.constant 0 : index
      %c0_10 = arith.constant 0 : index
      %15 = vector.load %arg6[%c0_9, %c0_10] : memref<16x128xf32, #tpu.memory_space<vmem>>, vector<16x128xf32>
      tpu.vector_store %arg6[%c0_9, %c0_10], %14 {strides = array<i32>} : memref<16x128xf32, #tpu.memory_space<vmem>>, vector<16x128xf32>,
    } else {
    }
    return
  }
  func.func @transform_0(%arg0: i32, %arg1: i32, %arg2: i32) -> (i32, i32) {
    %c0_i32 = arith.constant 0 : i32
    %c0_i32_0 = arith.constant 0 : i32
    return %arg0, %c0_i32 : i32, i32
  }
  func.func @transform_1(%arg0: i32, %arg1: i32, %arg2: i32) -> (i32, i32) {
    %c0_i32 = arith.constant 0 : i32
    %c0_i32_0 = arith.constant 0 : i32
    return %c0_i32, %arg2 : i32, i32
  }
  func.func @transform_2(%arg0: i32, %arg1: i32, %arg2: i32) -> (i32, i32) {
    %c0_i32 = arith.constant 0 : i32
    %c0_i32_0 = arith.constant 0 : i32
    return %c0_i32, %arg2 : i32, i32
  }
  func.func @transform_3(%arg0: i32, %arg1: i32, %arg2: i32) -> (i32, i32) {
    %0 = arith.muli %arg2, %arg1 : i32
    %c0_i32 = arith.constant 0 : i32
    return %arg0, %0 : i32, i32
  }
}

</mosaic_0001>

<llo_original>
// kernel: tpu_custom_call.1
$region0: #{tpu_custom_call.1}
  #allocation0 [shape = 'u32[]', space=smem, size = 0x4, offset = 0x4, fixed_abs, tag = 'smem constant byte address 0x4 - core index']
  #allocation1 [shape = 'u32[144,128]{1,0:T(1,128)}', space=vmem, size = 0x12000, scoped, tag = 'internal scratch']
  #allocation2 [shape = 'f32[16,1]{1,0:T(8,128)}', space=vmem, size = 0x2000, scoped, tag = 'scratch operand']
  #allocation3 [shape = 'f32[16,1]{1,0:T(8,128)}', space=vmem, size = 0x2000, scoped, tag = 'scratch operand']
  %s0 = inlined_call_operand.hbm [shape: bf16[16,32], index: 0, kind: input, shape index: {}]
  %s1 = inlined_call_operand.hbm [shape: bf16[32,128], index: 1, kind: input, shape index: {}]
  %s2 = inlined_call_operand.vmem [shape: f32[1,128], index: 2, kind: input, shape index: {}]
  %s3 = inlined_call_operand.hbm [shape: f32[16,128], index: 3, kind: output, shape index: {}]
  %s4 = sld [smem:[#allocation0]]
  $region69: #{tpu_custom_call.1} parent=0
    _
  %s6 = ssub.s32 1, %s4
  %s7 = scalar_select 0, %s6, %s4
  $region1: #{tpu_custom_call.1} parent=0
    #allocation4 [shape = 'u8[4096]{0}', space=vmem, size = 0x1000, scoped, tag = 'input window, operand 0, single buffered']
    #allocation5 [shape = 's32[2]{0}', space=sflag, size = 0x8, scoped, tag = 'scoped memory for tpu_custom_call.1']
    #allocation6 [shape = 's32[2]{0}', space=sflag, size = 0x8, scoped, tag = 'scoped memory for tpu_custom_call.1']
    #allocation7 [shape = 'u8[8192]{0}', space=vmem, size = 0x2000, scoped, tag = 'input window, operand 1, single buffered']
    #allocation8 [shape = 's32[1]{0}', space=sflag, size = 0x4, scoped, tag = 'scoped memory for tpu_custom_call.1']
    #allocation9 [shape = 'u8[16384]{0}', space=vmem, size = 0x4000, scoped, tag = 'output window, operand 0']
    %8 = vsyncpa [#allocation5], 0
    %9 = vsyncpa [#allocation8], 0
    %10 = vsyncpa [#allocation6], 0
    %s11 = scalar_lea.sflag [#allocation6], 1
    %12 = vsyncpa %s11, 0
    loop: start=0, step=1, limit=4
    $region2: #{tpu_custom_call.1} parent=1 // loop_pre_header
      _
    $region3: #{tpu_custom_call.1} parent=1 // loop_header
      %s14 = sphi 0, %s18
      %p15 = scmp.ge.s32.totalorder %s14, 4
      %s21 = sphi 0, %s40
      %s22 = sphi 0, %s36
      %s23 = sphi 0, %s32
      %s24 = sphi 0, %s21
      %s25 = sphi 0, %s22
      %s26 = sphi 0, %s23
      %s27 = sphi 0, %s24
      %s28 = sphi 0, %s25
      %s29 = sphi 0, %s26
      %s43 = sphi 0, %s45
      %s46 = sphi 0, %s43
      %s47 = sphi 0, %s46
      %s63 = sphi 0, %s47
      %s69 = sphi 0, %s71
      %s72 = sphi 0, %s69
      %s73 = sphi 0, %s72
      %s89 = sphi 0, %s73
      %s95 = sphi 0, %s97
      %s98 = sphi 0, %s95
      %s99 = sphi 0, %s98
      %s115 = sphi 0, %s99
      %s125 = sphi 0, %s127
      %s128 = sphi 0, %s125
      %s129 = sphi 0, %s128
      %s145 = sphi 0, %s129
    $region4: #{tpu_custom_call.1} parent=1 // loop_header_branch
      %17 = sbr.rel (%p15) target = $region8
    $region5: #{tpu_custom_call.1} parent=1 // loop_body
      %s19 = ssub.s32 %s14, 1
      %s20 = ssub.s32 %s14, 2
      %s30 = sadd.s32 1, %s23
      %p31 = scmp.ge.s32.totalorder %s30, 1
      %s32 = scalar_select %p31, 0, %s30
      %s33 = sadd.s32 1, %s22
      %s34 = scalar_select %p31, %s33, %s22
      %p35 = scmp.ge.s32.totalorder %s34, 2
      %s36 = scalar_select %p35, 0, %s34
      %s37 = sadd.s32 1, %s21
      %s38 = scalar_select %p35, %s37, %s21
      %p39 = scmp.ge.s32.totalorder %s38, 1
      %s40 = scalar_select %p39, 0, %s38
      %s41 = ssub.s32 %s21, %s40
      %p42 = scmp.eq.s32.totalorder %s41, 0
      %s44 = sadd.s32 %s43, 1
      %s45 = scalar_select %p42, %s43, %s44
      %p48 = pneg %p42
      %p49 = scmp.eq.s32.totalorder %s14, 1
      %p50 = por %p48, %p49
      %p51 = scmp.ne.s32.totalorder %s43, %s46
      %p52 = scmp.eq.s32.totalorder %s14, 0
      %p53 = por %p51, %p52
      %p54 = scmp.ne.s32.totalorder %s43, %s46
      %p55 = scmp.eq.s32.totalorder %s19, 1
      %p56 = por %p54, %p55
      %p57 = scmp.ne.s32.totalorder %s46, %s47
      %p58 = scmp.eq.s32.totalorder %s19, 0
      %p59 = por %p57, %p58
      %p60 = scmp.ne.s32.totalorder %s46, %s47
      %p61 = scmp.eq.s32.totalorder %s20, 1
      %p62 = por %p60, %p61
      %p64 = scmp.ne.s32.totalorder %s47, %s63
      %p65 = scmp.eq.s32.totalorder %s20, 0
      %p66 = por %p64, %p65
      %s67 = ssub.s32 %s23, %s32
      %p68 = scmp.eq.s32.totalorder %s67, 0
      %s70 = sadd.s32 %s69, 1
      %s71 = scalar_select %p68, %s69, %s70
      %p74 = pneg %p68
      %p75 = scmp.eq.s32.totalorder %s14, 1
      %p76 = por %p74, %p75
      %p77 = scmp.ne.s32.totalorder %s69, %s72
      %p78 = scmp.eq.s32.totalorder %s14, 0
      %p79 = por %p77, %p78
      %p80 = scmp.ne.s32.totalorder %s69, %s72
      %p81 = scmp.eq.s32.totalorder %s19, 1
      %p82 = por %p80, %p81
      %p83 = scmp.ne.s32.totalorder %s72, %s73
      %p84 = scmp.eq.s32.totalorder %s19, 0
      %p85 = por %p83, %p84
      %p86 = scmp.ne.s32.totalorder %s72, %s73
      %p87 = scmp.eq.s32.totalorder %s20, 1
      %p88 = por %p86, %p87
      %p90 = scmp.ne.s32.totalorder %s73, %s89
      %p91 = scmp.eq.s32.totalorder %s20, 0
      %p92 = por %p90, %p91
      %s93 = ssub.s32 %s23, %s32
      %p94 = scmp.eq.s32.totalorder %s93, 0
      %s96 = sadd.s32 %s95, 1
      %s97 = scalar_select %p94, %s95, %s96
      %p100 = pneg %p94
      %p101 = scmp.eq.s32.totalorder %s14, 1
      %p102 = por %p100, %p101
      %p103 = scmp.ne.s32.totalorder %s95, %s98
      %p104 = scmp.eq.s32.totalorder %s14, 0
      %p105 = por %p103, %p104
      %p106 = scmp.ne.s32.totalorder %s95, %s98
      %p107 = scmp.eq.s32.totalorder %s19, 1
      %p108 = por %p106, %p107
      %p109 = scmp.ne.s32.totalorder %s98, %s99
      %p110 = scmp.eq.s32.totalorder %s19, 0
      %p111 = por %p109, %p110
      %p112 = scmp.ne.s32.totalorder %s98, %s99
      %p113 = scmp.eq.s32.totalorder %s20, 1
      %p114 = por %p112, %p113
      %p116 = scmp.ne.s32.totalorder %s99, %s115
      %p117 = scmp.eq.s32.totalorder %s20, 0
      %p118 = por %p116, %p117
      %s119 = smul.u32 %s23, %s22
      %s120 = smul.u32 %s32, %s36
      %s121 = ssub.s32 %s21, %s40
      %s122 = ssub.s32 %s119, %s120
      %s123 = sor.u32 %s121, %s122
      %p124 = scmp.eq.s32.totalorder %s123, 0
      %s126 = sadd.s32 %s125, 1
      %s127 = scalar_select %p124, %s125, %s126
      %p130 = pneg %p124
      %p131 = scmp.eq.s32.totalorder %s14, 1
      %p132 = por %p130, %p131
      %p133 = scmp.ne.s32.totalorder %s125, %s128
      %p134 = scmp.eq.s32.totalorder %s14, 0
      %p135 = por %p133, %p134
      %p136 = scmp.ne.s32.totalorder %s125, %s128
      %p137 = scmp.eq.s32.totalorder %s19, 1
      %p138 = por %p136, %p137
      %p139 = scmp.ne.s32.totalorder %s128, %s129
      %p140 = scmp.eq.s32.totalorder %s19, 0
      %p141 = por %p139, %p140
      %p142 = scmp.ne.s32.totalorder %s128, %s129
      %p143 = scmp.eq.s32.totalorder %s20, 1
      %p144 = por %p142, %p143
      %p146 = scmp.ne.s32.totalorder %s129, %s145
      %p147 = scmp.eq.s32.totalorder %s20, 0
      %p148 = por %p146, %p147
      %p149 = scmp.le.s32.totalorder 1, %s14
      %p150 = scmp.lt.s32.totalorder %s14, 3
      %p151 = pnand %p149, %p150
      %p152 = pneg %p151
      // Predicated region
      $region9: #{tpu_custom_call.1} parent=5 // pred_check
        _
      $region10: #{tpu_custom_call.1} parent=5 // pred_check_branch
        %154 = sbr.rel (%p151) target = $region12
      $region11: #{tpu_custom_call.1} parent=5 // pred_region
        %s155 = ssub.s32 %s14, 1
        // Predicated region
        $region13: #{tpu_custom_call.1} parent=11 // pred_check
          %p156 = pneg %p59
        $region14: #{tpu_custom_call.1} parent=11 // pred_check_branch
          %158 = sbr.rel (%p156) target = $region16
        $region15: #{tpu_custom_call.1} parent=11 // pred_region
          %s159 = smul.u32 2, %s24
          %s161 = ssub.s32 128, 128
          %162 = vsyncadd [#allocation5], %s161
          %s163 = smul.addr %s159, 64
          %s164 = scalar_lea.hbm %s0, %s163
          %s165 = sshll.u32 [#allocation4], 4
          %s166 = int_to_ptr.vmem [resolvable:$true] %s165
          %171 = dma.hbm_to_vmem [thread:$0]  %s164, 128, %s166, [#allocation5], 64, 64, 4
        $region16: #{tpu_custom_call.1} parent=11 // pred_fallthru
          _
        // Predicated region
        $region17: #{tpu_custom_call.1} parent=11 // pred_check
          %p172 = pneg %p85
        $region18: #{tpu_custom_call.1} parent=11 // pred_check_branch
          %174 = sbr.rel (%p172) target = $region20
        $region19: #{tpu_custom_call.1} parent=11 // pred_region
          %s176 = ssub.s32 256, 256
          %177 = vsyncadd [#allocation8], %s176
          %s178 = smul.addr %s26, 64
          %s179 = scalar_lea.hbm %s1, %s178
          %s180 = sshll.u32 [#allocation7], 4
          %s181 = int_to_ptr.vmem [resolvable:$true] %s180
          %186 = dma.hbm_to_vmem [thread:$0]  %s179, 256, %s181, [#allocation8], 64, 64, 4
        $region20: #{tpu_custom_call.1} parent=11 // pred_fallthru
          _
        // Predicated region
        $region21: #{tpu_custom_call.1} parent=11 // pred_check
          %p187 = pneg %p111
        $region22: #{tpu_custom_call.1} parent=11 // pred_check_branch
          %189 = sbr.rel (%p187) target = $region24
        $region23: #{tpu_custom_call.1} parent=11 // pred_region
          %p190 = scmp.lt.s32.totalorder %s26, 0
          %s191 = scalar_select %p190, %s26, 0
          %s192 = scalar_lea.vmem %s2, %s191
        $region24: #{tpu_custom_call.1} parent=11 // pred_fallthru
          _
      $region12: #{tpu_custom_call.1} parent=5 // pred_fallthru
        _
      %p193 = scmp.lt.s32.totalorder %s14, 2
      // Predicated region
      $region25: #{tpu_custom_call.1} parent=5 // pred_check
        %p194 = pneg %p193
      $region26: #{tpu_custom_call.1} parent=5 // pred_check_branch
        %196 = sbr.rel (%p194) target = $region28
      $region27: #{tpu_custom_call.1} parent=5 // pred_region
        _
      $region28: #{tpu_custom_call.1} parent=5 // pred_fallthru
        _
      %p197 = scmp.le.s32.totalorder 1, %s14
      %p198 = scmp.lt.s32.totalorder %s14, 3
      %p199 = pnand %p197, %p198
      %p200 = pneg %p199
      // Predicated region
      $region29: #{tpu_custom_call.1} parent=5 // pred_check
        _
      $region30: #{tpu_custom_call.1} parent=5 // pred_check_branch
        %202 = sbr.rel (%p199) target = $region32
      $region31: #{tpu_custom_call.1} parent=5 // pred_region
        %s203 = ssub.s32 %s14, 1
        // Predicated region
        $region33: #{tpu_custom_call.1} parent=31 // pred_check
          %p204 = pneg %p59
        $region34: #{tpu_custom_call.1} parent=31 // pred_check_branch
          %206 = sbr.rel (%p204) target = $region36
        $region35: #{tpu_custom_call.1} parent=31 // pred_region
          %207 = dma.done [#allocation5], 128
        $region36: #{tpu_custom_call.1} parent=31 // pred_fallthru
          _
        // Predicated region
        $region37: #{tpu_custom_call.1} parent=31 // pred_check
          %p208 = pneg %p85
        $region38: #{tpu_custom_call.1} parent=31 // pred_check_branch
          %210 = sbr.rel (%p208) target = $region40
        $region39: #{tpu_custom_call.1} parent=31 // pred_region
          %211 = dma.done [#allocation8], 256
        $region40: #{tpu_custom_call.1} parent=31 // pred_fallthru
          _
        %p212 = pneg %p59
        %p213 = pneg %p56
        %p214 = pneg %p85
        %p215 = pneg %p82
        %p216 = scmp.lt.s32.totalorder %s26, 0
        %s217 = scalar_select %p216, %s26, 0
        %s218 = scalar_lea.vmem %s2, %s217
        %p219 = pneg %p111
        %p220 = pneg %p108
        %p221 = pneg %p141
        %p222 = pneg %p138
        %s223 = sand.u32 %s128, 1
        %s224 = scalar_lea.sflag [#allocation6], %s223
        %s225 = sand.u32 %s128, 1
        %s226 = smul.addr %s225, 16
        %s227 = scalar_lea.vmem [#allocation9], %s226
        %s228 = smul.u32 2, %s24
        %p229 = scmp.lt.s32.totalorder %s26, 0
        %s230 = scalar_select %p229, %s26, 0
        %s231 = scalar_lea.vmem %s2, %s230
        %s232 = smul.u32 %s26, %s25
        %s233 = smul.u32 2, %s24
        %v235 = vld [vmem:[#allocation4] sm:$0xf]
        %v236 = vld [vmem:[#allocation4 + $0x4] sm:$0xf]
        %v237 = vld [vmem:[#allocation7] sm:$0xf]
        %v238 = vld [vmem:[#allocation7 + $0x4] sm:$0xf]
        %v239 = vld [vmem:[#allocation7 + $0x8] sm:$0xf]
        %v240 = vld [vmem:[#allocation7 + $0xc] sm:$0xf]
        %v241 = vld [vmem:[%s231] sm:$0x1]
        %v243 = vlaneseq
        %v244 = vshrl.u32 %v243, 7
        %v245 = vsub.s32 0, %v244
        %v246 = vrot.slane %v241, %v245
        %v250 = vunpack.c.l.b16 %v235
        %v251 = vunpack.c.l.b16 %v236
        %v252 = vpack.c.b16 %v251, %v250
        %v257 = vunpack.c.l.b16 %v237
        %v258 = vunpack.c.l.b16 %v238
        %v259 = vunpack.c.l.b16 %v239
        %v260 = vunpack.c.l.b16 %v240
        %v261 = vpack.c.b16 %v258, %v257
        %v262 = vpack.c.b16 %v260, %v259
        %vm265 = vcmask 261120
        %v267 = vsel %vm265, %v252, 0
        %269 = vmatprep.subr.bf16.mxu0 0
        %270 = vmatpush1.bf16.msra.mxu0 %v261
        %271 = vmatprep.subr.bf16.mxu0 0
        %272 = vmatpush1.bf16.msra.mxu0 %v262
        %273 = vmatprep.subr.bf16.mxu0 0
        %274 = vmatpush1.bf16.msra.mxu0 0
        %275 = vmatprep.subr.bf16.mxu0 0
        %276 = vmatpush1.bf16.msra.mxu0 0
        %277 = vmatprep.subr.bf16.mxu0 0
        %278 = vmatpush1.bf16.msra.mxu0 0
        %279 = vmatprep.subr.bf16.mxu0 0
        %280 = vmatpush1.bf16.msra.mxu0 0
        %281 = vmatprep.subr.bf16.mxu0 0
        %282 = vmatpush1.bf16.msra.mxu0 0
        %283 = vmatprep.subr.bf16.mxu0 0
        %284 = vmatpush1.bf16.msra.mxu0 0
        %285 = vmatprep.subr.bf16.mxu0 0
        %286 = vmatpush1.bf16.msra.mxu0 0
        %287 = vmatprep.subr.bf16.mxu0 0
        %288 = vmatpush1.bf16.msra.mxu0 0
        %289 = vmatprep.subr.bf16.mxu0 0
        %290 = vmatpush1.bf16.msra.mxu0 0
        %291 = vmatprep.subr.bf16.mxu0 0
        %292 = vmatpush1.bf16.msra.mxu0 0
        %293 = vmatprep.subr.bf16.mxu0 0
        %294 = vmatpush1.bf16.msra.mxu0 0
        %295 = vmatprep.subr.bf16.mxu0 0
        %296 = vmatpush1.bf16.msra.mxu0 0
        %297 = vmatprep.subr.bf16.mxu0 0
        %298 = vmatpush1.bf16.msra.mxu0 0
        %299 = vmatprep.subr.bf16.mxu0 0
        %300 = vmatpush1.bf16.msra.mxu0 0
        %301 = vmatprep.mubr.bf16.mxu0 0
        %302 = vmatmul.mubr.bf16.gmra.mrb[0].mxu0 %v267
        %v303 = vpop.f32.mrb[0].mxu0
        %v304 = vadd.f32 %v246, %v303
        %v305 = vpop.f32.mrb[0].mxu0
        %v306 = vpop.f32.mrb[0].mxu0
        %v307 = vadd.f32 %v246, %v306
        %v308 = vpop.f32.mrb[0].mxu0
        %309 = vdwg.mxu0
        %p310 = scmp.eq.s32.totalorder %s25, 0
        // Predicated region
        $region41: #{tpu_custom_call.1} parent=31 // pred_check
          %p311 = pneg %p310
        $region42: #{tpu_custom_call.1} parent=31 // pred_check_branch
          %313 = sbr.rel (%p311) target = $region44
        $region43: #{tpu_custom_call.1} parent=31 // pred_region
          %p314 = scmp.eq.s32.totalorder %s26, 0
          // Predicated region
          $region45: #{tpu_custom_call.1} parent=43 // pred_check
            %p315 = pneg %p314
          $region46: #{tpu_custom_call.1} parent=43 // pred_check_branch
            %317 = sbr.rel (%p315) target = $region48
          $region47: #{tpu_custom_call.1} parent=43 // pred_region
            %vm318 = vcmask 7168
            %319 = vst.msk [vmem:[#allocation2] sm:$0xff] %vm318, -inf
            %320 = vst.msk [vmem:[#allocation2 + $0x8] sm:$0xff] %vm318, -inf
            %321 = vst.msk [vmem:[#allocation3] sm:$0xff] %vm318, 0.0
            %322 = vst.msk [vmem:[#allocation3 + $0x8] sm:$0xff] %vm318, 0.0
          $region48: #{tpu_custom_call.1} parent=43 // pred_fallthru
            _
          %v323 = vld [vmem:[#allocation2] sm:$0xff]
          %v324 = vld [vmem:[#allocation2 + $0x8] sm:$0xff]
          %325 = vmax.xlane.f32.xlu0 %v304
          %v326 = vpop.xlane.xlu0 %325
          %327 = vmax.xlane.f32.xlu0 %v307
          %v328 = vpop.xlane.xlu0 %327
          %v329 = vmax.f32 %v323, %v326
          %v330 = vmax.f32 %v324, %v328
          %v331 = vld [vmem:[#allocation3] sm:$0xff]
          %v332 = vld [vmem:[#allocation3 + $0x8] sm:$0xff]
          %v333 = vsub.f32 %v323, %v329
          %v334 = vsub.f32 %v324, %v330
          %v335 = vmul.f32 %v333, 1.442695
          %v336 = vpow.pop %v335
          %v337 = vmul.f32 %v334, 1.442695
          %v338 = vpow.pop %v337
          %v339 = vmul.f32 %v331, %v336
          %v340 = vmul.f32 %v332, %v338
          %342 = vset.pattern.permute.xlu0 0
          %343 = vperm.xlu0 %342, %v329
          %v344 = vpop.permute.xlu0 %343
          %347 = vset.pattern.permute.xlu0 0
          %348 = vperm.xlu0 %347, %v330
          %v349 = vpop.permute.xlu0 %348
          %v351 = vsub.f32 %v304, %v344
          %v352 = vsub.f32 %v307, %v349
          %v353 = vmul.f32 %v351, 1.442695
          %v354 = vpow.pop %v353
          %v355 = vmul.f32 %v352, 1.442695
          %v356 = vpow.pop %v355
          %357 = vadd.xlane.f32.xlu0 %v354
          %v358 = vpop.xlane.xlu0 %357
          %359 = vadd.xlane.f32.xlu0 %v356
          %v360 = vpop.xlane.xlu0 %359
          %v361 = vadd.f32 %v339, %v358
          %v362 = vadd.f32 %v340, %v360
          %vm363 = vcmask 7168
          %364 = vst.msk [vmem:[#allocation3] sm:$0xff] %vm363, %v361
          %365 = vst.msk [vmem:[#allocation3 + $0x8] sm:$0xff] %vm363, %v362
          %366 = vst.msk [vmem:[#allocation2] sm:$0xff] %vm363, %v329
          %367 = vst.msk [vmem:[#allocation2 + $0x8] sm:$0xff] %vm363, %v330
          // Predicated region
          $region49: #{tpu_custom_call.1} parent=43 // pred_check
            %p368 = pneg %p314
          $region50: #{tpu_custom_call.1} parent=43 // pred_check_branch
            %370 = sbr.rel (%p368) target = $region52
          $region51: #{tpu_custom_call.1} parent=43 // pred_region
            %v371 = vld [vmem:[#allocation2] sm:$0xff]
            %v372 = vld [vmem:[#allocation2 + $0x8] sm:$0xff]
            %v373 = vld [vmem:[#allocation3] sm:$0xff]
            %v374 = vld [vmem:[#allocation3 + $0x8] sm:$0xff]
            %v375 = vlog2.pop %v373
            %v376 = vmul.f32 %v375, 0.6931472
            %v377 = vlog2.pop %v374
            %v378 = vmul.f32 %v377, 0.6931472
            %v379 = vadd.f32 %v371, %v376
            %v380 = vadd.f32 %v372, %v378
            %381 = vst.msk [vmem:[#allocation2] sm:$0xff] %vm363, %v379
            %382 = vst.msk [vmem:[#allocation2 + $0x8] sm:$0xff] %vm363, %v380
          $region52: #{tpu_custom_call.1} parent=43 // pred_fallthru
            _
        $region44: #{tpu_custom_call.1} parent=31 // pred_fallthru
          _
        %p383 = scmp.eq.s32.totalorder %s25, 1
        // Predicated region
        $region53: #{tpu_custom_call.1} parent=31 // pred_check
          %p384 = pneg %p383
        $region54: #{tpu_custom_call.1} parent=31 // pred_check_branch
          %386 = sbr.rel (%p384) target = $region56
        $region55: #{tpu_custom_call.1} parent=31 // pred_region
          %v387 = vld [vmem:[#allocation2] sm:$0xff]
          %v388 = vld [vmem:[#allocation2 + $0x8] sm:$0xff]
          %390 = vset.pattern.permute.xlu0 0
          %391 = vperm.xlu0 %390, %v387
          %v392 = vpop.permute.xlu0 %391
          %395 = vset.pattern.permute.xlu0 0
          %396 = vperm.xlu0 %395, %v388
          %v397 = vpop.permute.xlu0 %396
          %v399 = vsub.f32 %v304, %v392
          %v400 = vsub.f32 %v307, %v397
          %401 = vst [vmem:[%s227] sm:$0xff] %v399
          %402 = vst [vmem:[%s227 + $0x8] sm:$0xff] %v400
        $region56: #{tpu_custom_call.1} parent=31 // pred_fallthru
          _
        %s403 = sand.u32 %s128, 1
        %s404 = scalar_lea.sflag [#allocation6], %s403
        %s405 = sand.u32 %s128, 1
        %s406 = smul.addr %s405, 16
        %s407 = scalar_lea.vmem [#allocation9], %s406
        // Predicated region
        $region57: #{tpu_custom_call.1} parent=31 // pred_check
          %p408 = pneg %p138
        $region58: #{tpu_custom_call.1} parent=31 // pred_check_branch
          %410 = sbr.rel (%p408) target = $region60
        $region59: #{tpu_custom_call.1} parent=31 // pred_region
          %s411 = smul.u32 %s26, %s25
          %s412 = smul.u32 2, %s24
          %s414 = ssub.s32 256, 256
          %415 = vsyncadd %s404, %s414
          %s416 = sadd.s32 %s411, %s412
          %s417 = smul.addr %s416, 128
          %s418 = scalar_lea.hbm %s3, %s417
          %s419 = sshll.u32 %s407, 4
          %s420 = int_to_ptr.vmem [resolvable:$true] %s419
          %425 = dma.vmem_to_hbm [thread:$0]  %s420, 256, %s418, %s404, 128, 128, 8
        $region60: #{tpu_custom_call.1} parent=31 // pred_fallthru
          _
      $region32: #{tpu_custom_call.1} parent=5 // pred_fallthru
        _
      %p426 = scmp.le.s32.totalorder 2, %s14
      // Predicated region
      $region61: #{tpu_custom_call.1} parent=5 // pred_check
        %p427 = pneg %p426
      $region62: #{tpu_custom_call.1} parent=5 // pred_check_branch
        %429 = sbr.rel (%p427) target = $region64
      $region63: #{tpu_custom_call.1} parent=5 // pred_region
        %s430 = ssub.s32 %s14, 2
        // Predicated region
        $region65: #{tpu_custom_call.1} parent=63 // pred_check
          %p431 = pneg %p144
        $region66: #{tpu_custom_call.1} parent=63 // pred_check_branch
          %433 = sbr.rel (%p431) target = $region68
        $region67: #{tpu_custom_call.1} parent=63 // pred_region
          %s434 = sand.u32 %s129, 1
          %s435 = scalar_lea.sflag [#allocation6], %s434
          %s436 = sand.u32 %s129, 1
          %s437 = smul.addr %s436, 16
          %s438 = scalar_lea.vmem [#allocation9], %s437
          %439 = dma.done %s435, 256
        $region68: #{tpu_custom_call.1} parent=63 // pred_fallthru
          _
      $region64: #{tpu_custom_call.1} parent=5 // pred_fallthru
        _
    $region6: #{tpu_custom_call.1} parent=1 // loop_footer
      %s18 = sadd.s32 1, %s14
    $region7: #{tpu_custom_call.1} parent=1 // loop_footer_branch
      %13 = sbr.rel target = $region3
    $region8: #{tpu_custom_call.1} parent=1 // loop_exit
      _
    %440 = vsyncpa [#allocation5], 1
    %s441 = scalar_lea.sflag [#allocation5], 1
    %442 = vsyncpa %s441, 1
    %443 = vsyncpa [#allocation8], 1
    %444 = vsyncpa [#allocation6], 1
    %s445 = scalar_lea.sflag [#allocation6], 1
    %446 = vsyncpa %s445, 1

</llo_original>
